<compile_context>
chip_gen: v7x
topology: tpu7x:2x2x1
jax: 0.10.0
libtpu: 0.0.40
codegen_flags: <defaults>
</compile_context>

<pallas_src>
import jax
import jax.numpy as jnp
from jax import lax
from jax.experimental import pallas as pl
from jax.experimental.pallas import tpu as pltpu

_EPS = 0.0001
_FILL = 0.1
_LANES = 128
_SUBLANES = 8
_SUB_ROWS = 256     # rows per in-kernel sub-chunk (bounds d1/d2 live ranges)
_PAD_VAL = 1.0      # log(1.0) - log(1.0) == 0 -> padded elements contribute nothing


def _round_up(x, m):
    return ((x + m - 1) // m) * m


def _make_kernel(rows, block_rows, blocks_per_part, sub_rows, n_sub):
    def kernel(pred_ref, gt_ref, out_ref):
        c = pl.program_id(0)
        j = pl.program_id(1)

        @pl.when(j == 0)
        def _():
            out_ref[...] = jnp.zeros_like(out_ref)

        # Logical (unclamped) position of this block; used for the bounds mask so
        # ragged-tail rows and overshoot grid steps contribute exactly nothing.
        base_row = (c * blocks_per_part + j) * block_rows

        def body(i, carry):
            s1, q1, s2, q2 = carry
            start = pl.multiple_of(i * sub_rows, sub_rows)
            g = gt_ref[pl.ds(start, sub_rows), :].astype(jnp.float32)
            p0 = pred_ref[0, pl.ds(start, sub_rows), :].astype(jnp.float32)
            p1 = pred_ref[1, pl.ds(start, sub_rows), :].astype(jnp.float32)

            row_ids = base_row + start + lax.broadcasted_iota(
                jnp.int32, (sub_rows, _LANES), 0)
            # Must stay a select (never multiply-by-mask): out-of-bounds rows hold
            # undefined data and masked in-bounds entries give -inf/NaN logs.
            mask = (row_ids >= rows) | (g < _EPS) | (p0 < _EPS) | (p1 < _EPS)

            # Unmasked: log(p) - log(g).  Masked: masked_fill(0.1) would give
            # log(0.1) - log(0.1) == 0, so select 0 directly.
            lg = jnp.log(g)
            d1 = jnp.where(mask, 0.0, jnp.log(p0) - lg)
            d2 = jnp.where(mask, 0.0, jnp.log(p1) - lg)

            # Fold (sub_rows, 128) into (8, 128) lane/sublane partials: VPU adds only.
            d1v = d1.reshape(sub_rows // _SUBLANES, _SUBLANES, _LANES)
            d2v = d2.reshape(sub_rows // _SUBLANES, _SUBLANES, _LANES)
            s1 = s1 + jnp.sum(d1v, axis=0)
            q1 = q1 + jnp.sum(d1v * d1v, axis=0)
            s2 = s2 + jnp.sum(d2v, axis=0)
            q2 = q2 + jnp.sum(d2v * d2v, axis=0)
            return s1, q1, s2, q2

        zero = jnp.zeros((_SUBLANES, _LANES), jnp.float32)
        s1, q1, s2, q2 = lax.fori_loop(0, n_sub, body, (zero, zero, zero, zero),
                                       unroll=True)
        out_ref[0] += s1
        out_ref[1] += q1
        out_ref[2] += s2
        out_ref[3] += q2

    return kernel


def refine_loss(pred, gt, *, row_tile=2048, num_parts=2):
    """pred: (2, *gt.shape); gt: depth map.  Returns scalar f32 loss (Refine_loss.forward)."""
    assert pred.shape[0] == 2 and pred.shape[1:] == gt.shape
    n_total = gt.size

    # f32 / bf16 stream as-is (upcast to f32 inside the kernel); anything else -> f32.
    # Callers on HBM-bound v5e/v6e may pass bf16 inputs to halve traffic.
    if gt.dtype not in (jnp.dtype(jnp.float32), jnp.dtype(jnp.bfloat16)):
        gt = gt.astype(jnp.float32)
        pred = pred.astype(jnp.float32)

    # Lane-dense views via contiguous reshape only (zero-copy under jit).  A small
    # 1.0-pad copy is made only when the element count is not a multiple of 128.
    if n_total % _LANES == 0:
        rows = n_total // _LANES
        gt2 = gt.reshape(rows, _LANES)
        pr3 = pred.reshape(2, rows, _LANES)
    else:
        rows = n_total // _LANES + 1
        pad = rows * _LANES - n_total
        gt2 = jnp.concatenate(
            [gt.reshape(-1), jnp.full((pad,), _PAD_VAL, gt.dtype)]
        ).reshape(rows, _LANES)
        pr3 = jnp.concatenate(
            [pred.reshape(2, -1), jnp.full((2, pad), _PAD_VAL, pred.dtype)], axis=1
        ).reshape(2, rows, _LANES)

    num_parts = max(int(num_parts), 1)
    row_tile = max(_round_up(int(row_tile), _SUB_ROWS), _SUB_ROWS)

    # Sub-chunk size shrinks for tiny inputs so the (single) block hugs the array.
    sub_rows = min(_SUB_ROWS, _round_up(rows, 16))
    block_rows = min(row_tile, _round_up(pl.cdiv(rows, num_parts), sub_rows))
    assert block_rows % sub_rows == 0
    n_sub = block_rows // sub_rows

    total_blocks = pl.cdiv(rows, block_rows)
    num_parts = min(num_parts, total_blocks)
    blocks_per_part = pl.cdiv(total_blocks, num_parts)

    def blk_idx(c, j):
        # Clamp so overshoot steps (num_parts * blocks_per_part > total_blocks) never
        # request an out-of-range block; their contribution is masked in-kernel.
        return jnp.minimum(c * blocks_per_part + j, total_blocks - 1)

    kernel = _make_kernel(rows, block_rows, blocks_per_part, sub_rows, n_sub)

    parts = pl.pallas_call(
        kernel,
        out_shape=jax.ShapeDtypeStruct((num_parts, 4, _SUBLANES, _LANES), jnp.float32),
        grid_spec=pltpu.PrefetchScalarGridSpec(
            num_scalar_prefetch=0,
            grid=(num_parts, blocks_per_part),
            in_specs=[
                pl.BlockSpec((2, block_rows, _LANES),
                             lambda c, j: (0, blk_idx(c, j), 0)),
                pl.BlockSpec((block_rows, _LANES),
                             lambda c, j: (blk_idx(c, j), 0)),
            ],
            out_specs=pl.BlockSpec((None, 4, _SUBLANES, _LANES),
                                   lambda c, j: (c, 0, 0, 0)),
        ),
        compiler_params=pltpu.CompilerParams(
            dimension_semantics=("parallel", "arbitrary")),
    )(pr3, gt2)

    # Tiny final reduction + sqrt finalize in plain JAX.
    sums = jnp.sum(parts, axis=(0, 2, 3))   # [sum d1, sum d1^2, sum d2, sum d2^2]
    inv_n = 1.0 / float(n_total)
    m1, m1_sq = sums[0] * inv_n, sums[1] * inv_n
    m2, m2_sq = sums[2] * inv_n, sums[3] * inv_n
    # maximum(...) guards tiny negative cancellation; PyTorch would return NaN there
    # (intentional, documented divergence).
    loss1 = jnp.sqrt(jnp.maximum(m1_sq - 0.85 * m1 * m1, 0.0)) * 10.0
    loss2 = jnp.sqrt(jnp.maximum(m2_sq - 0.85 * m2 * m2, 0.0)) * 10.0
    return loss1 + loss2


def _refine_loss_ref(pred, gt):
    """Pure-JAX reference mirroring the PyTorch forward."""
    mask = (gt < _EPS) | (pred[0] < _EPS) | (pred[1] < _EPS)
    mg = jnp.where(mask, _FILL, gt)
    mp0 = jnp.where(mask, _FILL, pred[0])
    mp1 = jnp.where(mask, _FILL, pred[1])
    d1 = jnp.log(mp0) - jnp.log(mg)
    d2 = jnp.log(mp1) - jnp.log(mg)
    l1 = jnp.sqrt(jnp.mean(d1 ** 2) - 0.85 * jnp.mean(d1) ** 2) * 10.0
    l2 = jnp.sqrt(jnp.mean(d2 ** 2) - 0.85 * jnp.mean(d2) ** 2) * 10.0
    return l1 + l2


if __name__ == "__main__":
    key = jax.random.PRNGKey(0)
    k1, k2 = jax.random.split(key)
    # gt: depth-like map (N, C, H, W) = (2, 4, 16, 16); pred stacks two such maps.
    gt = jax.random.uniform(k1, (2, 4, 16, 16), jnp.float32, minval=0.0, maxval=5.0)
    pred = jax.random.uniform(k2, (2, 2, 4, 16, 16), jnp.float32, minval=0.0, maxval=5.0)

    loss = jax.block_until_ready(jax.jit(refine_loss)(pred, gt))
    ref = jax.block_until_ready(_refine_loss_ref(pred, gt))
    assert jnp.allclose(loss, ref, rtol=1e-4, atol=1e-4), (loss, ref)
    print("KERNEL_OK")
</pallas_src>

<mosaic_0001>
module attributes {stable_mosaic.version = 11 : i64} {
  func.func @kernel(%arg0: i32, %arg1: i32, %arg2: memref<2x16x128xf32, #tpu.memory_space<vmem>>, %arg3: memref<16x128xf32, #tpu.memory_space<vmem>>, %arg4: memref<1x4x8x128xf32, #tpu.memory_space<vmem>>) attributes {dimension_semantics = [#tpu.dimension_semantics<parallel>, #tpu.dimension_semantics<arbitrary>], iteration_bounds = array<i64: 1, 1>, scalar_prefetch = 0 : i64, scratch_operands = 0 : i64, tpu.core_type = #tpu.core_type<tc>, window_params = [{transform_indices = @transform_0, window_bounds = array<i64: 2, 16, 128>}, {transform_indices = @transform_1, window_bounds = array<i64: 16, 128>}, {transform_indices = @transform_2, window_bounds = array<i64: 1, 4, 8, 128>}]} {
    %c0_i32 = arith.constant 0 : i32
    %0 = arith.cmpi eq, %arg1, %c0_i32 : i32
    %1 = arith.extui %0 : i1 to i32
    %c0_i32_0 = arith.constant 0 : i32
    %2 = arith.cmpi ne, %1, %c0_i32_0 : i32
    scf.if %2 {
      %cst_47 = arith.constant 0.000000e+00 : f32
      %77 = vector.broadcast %cst_47 : f32 to vector<4x8x128xf32>
      %c0_48 = arith.constant 0 : index
      %c0_49 = arith.constant 0 : index
      %c0_50 = arith.constant 0 : index
      %c0_51 = arith.constant 0 : index
      %78 = vector.load %arg4[%c0_48, %c0_49, %c0_50, %c0_51] : memref<1x4x8x128xf32, #tpu.memory_space<vmem>>, vector<1x4x8x128xf32>
      %79 = vector.shape_cast %78 : vector<1x4x8x128xf32> to vector<4x8x128xf32>
      %80 = vector.shape_cast %77 : vector<4x8x128xf32> to vector<1x4x8x128xf32>
      tpu.vector_store %arg4[%c0_48, %c0_49, %c0_50, %c0_51], %80 {strides = array<i32>} : memref<1x4x8x128xf32, #tpu.memory_space<vmem>>, vector<1x4x8x128xf32>,
    } else {
    }
    %c1_i32 = arith.constant 1 : i32
    %3 = arith.muli %arg0, %c1_i32 : i32
    %4 = arith.addi %3, %arg1 : i32
    %c16_i32 = arith.constant 16 : i32
    %5 = arith.muli %4, %c16_i32 : i32
    %cst = arith.constant 0.000000e+00 : f32
    %6 = vector.broadcast %cst : f32 to vector<8x128xf32>
    %c0_i32_1 = arith.constant 0 : i32
    %c16_i32_2 = arith.constant 16 : i32
    %7 = arith.muli %c0_i32_1, %c16_i32_2 : i32
    %8 = tpu.assume_multiple %7, 16 : i32
    %9 = arith.index_cast %8 : i32 to index
    %c0 = arith.constant 0 : index
    %10 = vector.load %arg3[%9, %c0] : memref<16x128xf32, #tpu.memory_space<vmem>>, vector<16x128xf32>
    %c0_3 = arith.constant 0 : index
    %11 = arith.index_cast %8 : i32 to index
    %c0_4 = arith.constant 0 : index
    %12 = vector.load %arg2[%c0_3, %11, %c0_4] : memref<2x16x128xf32, #tpu.memory_space<vmem>>, vector<1x16x128xf32>
    %13 = vector.shape_cast %12 : vector<1x16x128xf32> to vector<16x128xf32>
    %c1 = arith.constant 1 : index
    %14 = arith.index_cast %8 : i32 to index
    %c0_5 = arith.constant 0 : index
    %15 = vector.load %arg2[%c1, %14, %c0_5] : memref<2x16x128xf32, #tpu.memory_space<vmem>>, vector<1x16x128xf32>
    %16 = vector.shape_cast %15 : vector<1x16x128xf32> to vector<16x128xf32>
    %17 = arith.addi %5, %8 : i32
    %18 = tpu.iota {dimensions = array<i32: 0>} : vector<16x128xi32>
    %19 = vector.broadcast %17 : i32 to vector<16x128xi32>
    %20 = arith.addi %19, %18 : vector<16x128xi32>
    %c16_i32_6 = arith.constant 16 : i32
    %21 = vector.broadcast %c16_i32_6 : i32 to vector<16x128xi32>
    %22 = arith.cmpi sge, %20, %21 : vector<16x128xi32>
    %cst_7 = arith.constant 9.99999974E-5 : f32
    %23 = vector.broadcast %cst_7 : f32 to vector<16x128xf32>
    %24 = arith.cmpf olt, %10, %23 : vector<16x128xf32>
    %25 = arith.ori %22, %24 : vector<16x128xi1>
    %cst_8 = arith.constant 9.99999974E-5 : f32
    %26 = vector.broadcast %cst_8 : f32 to vector<16x128xf32>
    %27 = arith.cmpf olt, %13, %26 : vector<16x128xf32>
    %28 = arith.ori %25, %27 : vector<16x128xi1>
    %cst_9 = arith.constant 9.99999974E-5 : f32
    %29 = vector.broadcast %cst_9 : f32 to vector<16x128xf32>
    %30 = arith.cmpf olt, %16, %29 : vector<16x128xf32>
    %31 = arith.ori %28, %30 : vector<16x128xi1>
    %32 = math.log %10 : vector<16x128xf32>
    %33 = math.log %13 : vector<16x128xf32>
    %34 = arith.subf %33, %32 : vector<16x128xf32>
    %cst_10 = arith.constant 0.000000e+00 : f32
    %35 = vector.broadcast %cst_10 : f32 to vector<16x128xf32>
    %36 = arith.select %31, %35, %34 : vector<16x128xi1>, vector<16x128xf32>
    %37 = math.log %16 : vector<16x128xf32>
    %38 = arith.subf %37, %32 : vector<16x128xf32>
    %cst_11 = arith.constant 0.000000e+00 : f32
    %39 = vector.broadcast %cst_11 : f32 to vector<16x128xf32>
    %40 = arith.select %31, %39, %38 : vector<16x128xi1>, vector<16x128xf32>
    %41 = vector.shape_cast %36 : vector<16x128xf32> to vector<2x8x128xf32>
    %42 = vector.shape_cast %40 : vector<16x128xf32> to vector<2x8x128xf32>
    %cst_12 = arith.constant dense<0.000000e+00> : vector<8x128xf32>
    %43 = vector.multi_reduction <add>, %41, %cst_12 [0] : vector<2x8x128xf32> to vector<8x128xf32>
    %44 = arith.addf %6, %43 : vector<8x128xf32>
    %45 = arith.mulf %41, %41 : vector<2x8x128xf32>
    %cst_13 = arith.constant dense<0.000000e+00> : vector<8x128xf32>
    %46 = vector.multi_reduction <add>, %45, %cst_13 [0] : vector<2x8x128xf32> to vector<8x128xf32>
    %47 = arith.addf %6, %46 : vector<8x128xf32>
    %cst_14 = arith.constant dense<0.000000e+00> : vector<8x128xf32>
    %48 = vector.multi_reduction <add>, %42, %cst_14 [0] : vector<2x8x128xf32> to vector<8x128xf32>
    %49 = arith.addf %6, %48 : vector<8x128xf32>
    %50 = arith.mulf %42, %42 : vector<2x8x128xf32>
    %cst_15 = arith.constant dense<0.000000e+00> : vector<8x128xf32>
    %51 = vector.multi_reduction <add>, %50, %cst_15 [0] : vector<2x8x128xf32> to vector<8x128xf32>
    %52 = arith.addf %6, %51 : vector<8x128xf32>
    %c1_i32_16 = arith.constant 1 : i32
    %c0_17 = arith.constant 0 : index
    %c0_18 = arith.constant 0 : index
    %c0_19 = arith.constant 0 : index
    %c0_20 = arith.constant 0 : index
    %53 = vector.load %arg4[%c0_17, %c0_18, %c0_19, %c0_20] : memref<1x4x8x128xf32, #tpu.memory_space<vmem>>, vector<1x1x8x128xf32>
    %54 = vector.shape_cast %53 : vector<1x1x8x128xf32> to vector<8x128xf32>
    %55 = arith.addf %54, %44 : vector<8x128xf32>
    %c0_21 = arith.constant 0 : index
    %c0_22 = arith.constant 0 : index
    %c0_23 = arith.constant 0 : index
    %c0_24 = arith.constant 0 : index
    %56 = vector.load %arg4[%c0_21, %c0_22, %c0_23, %c0_24] : memref<1x4x8x128xf32, #tpu.memory_space<vmem>>, vector<1x1x8x128xf32>
    %57 = vector.shape_cast %56 : vector<1x1x8x128xf32> to vector<8x128xf32>
    %58 = vector.shape_cast %55 : vector<8x128xf32> to vector<1x1x8x128xf32>
    tpu.vector_store %arg4[%c0_21, %c0_22, %c0_23, %c0_24], %58 {strides = array<i32>} : memref<1x4x8x128xf32, #tpu.memory_space<vmem>>, vector<1x1x8x128xf32>,
    %c0_25 = arith.constant 0 : index
    %c1_26 = arith.constant 1 : index
    %c0_27 = arith.constant 0 : index
    %c0_28 = arith.constant 0 : index
    %59 = vector.load %arg4[%c0_25, %c1_26, %c0_27, %c0_28] : memref<1x4x8x128xf32, #tpu.memory_space<vmem>>, vector<1x1x8x128xf32>
    %60 = vector.shape_cast %59 : vector<1x1x8x128xf32> to vector<8x128xf32>
    %61 = arith.addf %60, %47 : vector<8x128xf32>
    %c0_29 = arith.constant 0 : index
    %c1_30 = arith.constant 1 : index
    %c0_31 = arith.constant 0 : index
    %c0_32 = arith.constant 0 : index
    %62 = vector.load %arg4[%c0_29, %c1_30, %c0_31, %c0_32] : memref<1x4x8x128xf32, #tpu.memory_space<vmem>>, vector<1x1x8x128xf32>
    %63 = vector.shape_cast %62 : vector<1x1x8x128xf32> to vector<8x128xf32>
    %64 = vector.shape_cast %61 : vector<8x128xf32> to vector<1x1x8x128xf32>
    tpu.vector_store %arg4[%c0_29, %c1_30, %c0_31, %c0_32], %64 {strides = array<i32>} : memref<1x4x8x128xf32, #tpu.memory_space<vmem>>, vector<1x1x8x128xf32>,
    %c0_33 = arith.constant 0 : index
    %c2 = arith.constant 2 : index
    %c0_34 = arith.constant 0 : index
    %c0_35 = arith.constant 0 : index
    %65 = vector.load %arg4[%c0_33, %c2, %c0_34, %c0_35] : memref<1x4x8x128xf32, #tpu.memory_space<vmem>>, vector<1x1x8x128xf32>
    %66 = vector.shape_cast %65 : vector<1x1x8x128xf32> to vector<8x128xf32>
    %67 = arith.addf %66, %49 : vector<8x128xf32>
    %c0_36 = arith.constant 0 : index
    %c2_37 = arith.constant 2 : index
    %c0_38 = arith.constant 0 : index
    %c0_39 = arith.constant 0 : index
    %68 = vector.load %arg4[%c0_36, %c2_37, %c0_38, %c0_39] : memref<1x4x8x128xf32, #tpu.memory_space<vmem>>, vector<1x1x8x128xf32>
    %69 = vector.shape_cast %68 : vector<1x1x8x128xf32> to vector<8x128xf32>
    %70 = vector.shape_cast %67 : vector<8x128xf32> to vector<1x1x8x128xf32>
    tpu.vector_store %arg4[%c0_36, %c2_37, %c0_38, %c0_39], %70 {strides = array<i32>} : memref<1x4x8x128xf32, #tpu.memory_space<vmem>>, vector<1x1x8x128xf32>,
    %c0_40 = arith.constant 0 : index
    %c3 = arith.constant 3 : index
    %c0_41 = arith.constant 0 : index
    %c0_42 = arith.constant 0 : index
    %71 = vector.load %arg4[%c0_40, %c3, %c0_41, %c0_42] : memref<1x4x8x128xf32, #tpu.memory_space<vmem>>, vector<1x1x8x128xf32>
    %72 = vector.shape_cast %71 : vector<1x1x8x128xf32> to vector<8x128xf32>
    %73 = arith.addf %72, %52 : vector<8x128xf32>
    %c0_43 = arith.constant 0 : index
    %c3_44 = arith.constant 3 : index
    %c0_45 = arith.constant 0 : index
    %c0_46 = arith.constant 0 : index
    %74 = vector.load %arg4[%c0_43, %c3_44, %c0_45, %c0_46] : memref<1x4x8x128xf32, #tpu.memory_space<vmem>>, vector<1x1x8x128xf32>
    %75 = vector.shape_cast %74 : vector<1x1x8x128xf32> to vector<8x128xf32>
    %76 = vector.shape_cast %73 : vector<8x128xf32> to vector<1x1x8x128xf32>
    tpu.vector_store %arg4[%c0_43, %c3_44, %c0_45, %c0_46], %76 {strides = array<i32>} : memref<1x4x8x128xf32, #tpu.memory_space<vmem>>, vector<1x1x8x128xf32>,
    return
  }
  func.func @transform_0(%arg0: i32, %arg1: i32) -> (i32, i32, i32) {
    %c1_i32 = arith.constant 1 : i32
    %0 = arith.muli %arg0, %c1_i32 : i32
    %1 = arith.addi %0, %arg1 : i32
    %c0_i32 = arith.constant 0 : i32
    %2 = arith.minsi %1, %c0_i32 : i32
    %c0_i32_0 = arith.constant 0 : i32
    %c0_i32_1 = arith.constant 0 : i32
    %c0_i32_2 = arith.constant 0 : i32
    return %c0_i32_0, %2, %c0_i32_1 : i32, i32, i32
  }
  func.func @transform_1(%arg0: i32, %arg1: i32) -> (i32, i32) {
    %c1_i32 = arith.constant 1 : i32
    %0 = arith.muli %arg0, %c1_i32 : i32
    %1 = arith.addi %0, %arg1 : i32
    %c0_i32 = arith.constant 0 : i32
    %2 = arith.minsi %1, %c0_i32 : i32
    %c0_i32_0 = arith.constant 0 : i32
    %c0_i32_1 = arith.constant 0 : i32
    return %2, %c0_i32_0 : i32, i32
  }
  func.func @transform_2(%arg0: i32, %arg1: i32) -> (i32, i32, i32, i32) {
    %c0_i32 = arith.constant 0 : i32
    %c0_i32_0 = arith.constant 0 : i32
    %c0_i32_1 = arith.constant 0 : i32
    %c0_i32_2 = arith.constant 0 : i32
    return %arg0, %c0_i32, %c0_i32_0, %c0_i32_1 : i32, i32, i32, i32
  }
}

</mosaic_0001>

<llo_original>
// kernel: refine_loss.1
$region0: #{refine_loss.1}
  #allocation0 [shape = 'u32[]', space=smem, size = 0x4, offset = 0x4, fixed_abs, tag = 'smem constant byte address 0x4 - core index']
  #allocation1 [shape = 'u32[144,128]{1,0:T(1,128)}', space=vmem, size = 0x12000, scoped, tag = 'internal scratch']
  %s0 = inlined_call_operand.vmem [shape: f32[2,16,128], index: 0, kind: input, shape index: {}]
  %s1 = inlined_call_operand.vmem [shape: f32[16,128], index: 1, kind: input, shape index: {}]
  %s2 = inlined_call_operand.vmem [shape: f32[1,4,8,128], index: 2, kind: output, shape index: {}]
  %s3 = sld [smem:[#allocation0]]
  $region22: #{refine_loss.1} parent=0
    _
  %s5 = ssub.s32 1, %s3
  %s6 = scalar_select 0, %s5, %s3
  // Predicated region
  $region2: #{refine_loss.1} parent=0 // pred_check
    _
  $region3: #{refine_loss.1} parent=0 // pred_check_branch
    %8 = sbr.rel (0) target = $region5
  $region4: #{refine_loss.1} parent=0 // pred_region
    %s9 = sadd.s32 0, 0
    %p10 = scmp.lt.s32.totalorder %s9, 0
    %s11 = scalar_select %p10, %s9, 0
    %s12 = smul.u32 2, %s11
    %p13 = scmp.lt.s32.totalorder %s12, 1
    %s14 = scalar_select %p13, %s12, 1
    %s15 = smul.addr %s14, 8
    %s16 = scalar_lea.vmem %s0, %s15
    %s17 = sadd.s32 0, 0
    %p18 = scmp.lt.s32.totalorder %s17, 0
    %s19 = scalar_select %p18, %s17, 0
    %s20 = smul.u32 2, %s19
  $region5: #{refine_loss.1} parent=0 // pred_fallthru
    _
  // Predicated region
  $region6: #{refine_loss.1} parent=0 // pred_check
    _
  $region7: #{refine_loss.1} parent=0 // pred_check_branch
    %22 = sbr.rel (0) target = $region9
  $region8: #{refine_loss.1} parent=0 // pred_region
    %s23 = sadd.s32 0, 0
    %p24 = scmp.lt.s32.totalorder %s23, 0
    %s25 = scalar_select %p24, %s23, 0
    %s26 = smul.u32 2, %s25
    %p27 = scmp.lt.s32.totalorder %s26, 1
    %s28 = scalar_select %p27, %s26, 1
    %s29 = smul.addr %s28, 8
    %s30 = scalar_lea.vmem %s1, %s29
    %s31 = sadd.s32 0, 0
    %p32 = scmp.lt.s32.totalorder %s31, 0
    %s33 = scalar_select %p32, %s31, 0
    %s34 = smul.u32 2, %s33
  $region9: #{refine_loss.1} parent=0 // pred_fallthru
    _
  %s35 = sadd.s32 0, 0
  %p36 = scmp.lt.s32.totalorder %s35, 0
  %s37 = scalar_select %p36, %s35, 0
  %s38 = smul.u32 2, %s37
  %p39 = scmp.lt.s32.totalorder %s38, 1
  %s40 = scalar_select %p39, %s38, 1
  %s41 = smul.addr %s40, 8
  %s42 = scalar_lea.vmem %s0, %s41
  %s43 = sadd.s32 0, 0
  %p44 = scmp.lt.s32.totalorder %s43, 0
  %s45 = scalar_select %p44, %s43, 0
  %s46 = smul.u32 2, %s45
  %p47 = scmp.lt.s32.totalorder %s46, 1
  %s48 = scalar_select %p47, %s46, 1
  %s49 = smul.addr %s48, 8
  %s50 = scalar_lea.vmem %s1, %s49
  %s51 = sadd.s32 0, 0
  %p52 = scmp.lt.s32.totalorder %s51, 0
  %s53 = scalar_select %p52, %s51, 0
  %s54 = smul.u32 2, %s53
  %p55 = scmp.lt.s32.totalorder %s54, 1
  %s56 = scalar_select %p55, %s54, 1
  %s57 = smul.addr %s56, 8
  %s58 = scalar_lea.vmem %s0, %s57
  %s59 = sadd.s32 0, 0
  %p60 = scmp.lt.s32.totalorder %s59, 0
  %s61 = scalar_select %p60, %s59, 0
  %s62 = smul.u32 2, %s61
  %s63 = sadd.s32 0, 0
  %p64 = scmp.lt.s32.totalorder %s63, 0
  %s65 = scalar_select %p64, %s63, 0
  %s66 = smul.u32 2, %s65
  %p67 = scmp.lt.s32.totalorder %s66, 1
  %s68 = scalar_select %p67, %s66, 1
  %s69 = smul.addr %s68, 8
  %s70 = scalar_lea.vmem %s1, %s69
  %s71 = sadd.s32 0, 0
  %p72 = scmp.lt.s32.totalorder %s71, 0
  %s73 = scalar_select %p72, %s71, 0
  %s74 = smul.u32 2, %s73
  %p75 = scmp.eq.s32.totalorder 0, 0
  // Predicated region
  $region10: #{refine_loss.1} parent=0 // pred_check
    %p76 = pneg %p75
  $region11: #{refine_loss.1} parent=0 // pred_check_branch
    %78 = sbr.rel (%p76) target = $region13
  $region12: #{refine_loss.1} parent=0 // pred_region
    %79 = vst [vmem:[%s2] sm:$0xff] 0.0
    %80 = vst [vmem:[%s2 + $0x8] sm:$0xff] 0.0
    %81 = vst [vmem:[%s2 + $0x10] sm:$0xff] 0.0
    %82 = vst [vmem:[%s2 + $0x18] sm:$0xff] 0.0
  $region13: #{refine_loss.1} parent=0 // pred_fallthru
    _
  %s83 = sadd.s32 0, 0
  %s84 = smul.u32 %s83, 16
  %v85 = vld [vmem:[%s70] sm:$0xff]
  %v86 = vld [vmem:[%s70 + $0x8] sm:$0xff]
  %v87 = vld [vmem:[%s58] sm:$0xff]
  %v88 = vld [vmem:[%s58 + $0x8] sm:$0xff]
  %s89 = sadd.s32 0, 16
  %s90 = scalar_lea.vmem %s58, %s89
  %v91 = vld [vmem:[%s90] sm:$0xff]
  %v92 = vld [vmem:[%s90 + $0x8] sm:$0xff]
  %s93 = sadd.s32 %s84, 0
  %v94 = vlaneseq
  %v95 = vshrl.u32 %v94, 7
  %v96 = vadd.s32 %v95, 8
  %v97 = vstv %s93
  %v98 = vadd.s32 %v97, %v95
  %v99 = vadd.s32 %v97, %v96
  %vm100 = vcmp.ge.s32.totalorder %v98, 16
  %vm101 = vcmp.ge.s32.totalorder %v99, 16
  %vm102 = vcmp.lt.f32.partialorder %v85, 0.0001
  %vm103 = vcmp.lt.f32.partialorder %v86, 0.0001
  %vm104 = vmor %vm100, %vm102
  %vm105 = vmor %vm101, %vm103
  %vm106 = vcmp.lt.f32.partialorder %v87, 0.0001
  %vm107 = vcmp.lt.f32.partialorder %v88, 0.0001
  %vm108 = vmor %vm104, %vm106
  %vm109 = vmor %vm105, %vm107
  %vm110 = vcmp.lt.f32.partialorder %v91, 0.0001
  %vm111 = vcmp.lt.f32.partialorder %v92, 0.0001
  %vm112 = vmor %vm108, %vm110
  %vm113 = vmor %vm109, %vm111
  %v114 = vlog2.pop %v85
  %v115 = vmul.f32 %v114, 0.6931472
  %v116 = vlog2.pop %v86
  %v117 = vmul.f32 %v116, 0.6931472
  %v118 = vlog2.pop %v87
  %v119 = vmul.f32 %v118, 0.6931472
  %v120 = vlog2.pop %v88
  %v121 = vmul.f32 %v120, 0.6931472
  %v122 = vsub.f32 %v119, %v115
  %v123 = vsub.f32 %v121, %v117
  %v124 = vsel %vm112, 0.0, %v122
  %v125 = vsel %vm113, 0.0, %v123
  %v126 = vlog2.pop %v91
  %v127 = vmul.f32 %v126, 0.6931472
  %v128 = vlog2.pop %v92
  %v129 = vmul.f32 %v128, 0.6931472
  %v130 = vsub.f32 %v127, %v115
  %v131 = vsub.f32 %v129, %v117
  %v132 = vsel %vm112, 0.0, %v130
  %v133 = vsel %vm113, 0.0, %v131
  %v134 = vadd.f32 %v124, %v125
  %v135 = vadd.f32 %v134, 0.0
  %v136 = vmul.f32 %v124, %v124
  %v137 = vmul.f32 %v125, %v125
  %v138 = vadd.f32 %v136, %v137
  %v139 = vadd.f32 %v138, 0.0
  %v140 = vadd.f32 %v132, %v133
  %v141 = vadd.f32 %v140, 0.0
  %v142 = vmul.f32 %v132, %v132
  %v143 = vmul.f32 %v133, %v133
  %v144 = vadd.f32 %v142, %v143
  %v145 = vadd.f32 %v144, 0.0
  %v146 = vld [vmem:[%s2] sm:$0xff]
  %v147 = vadd.f32 %v146, %v135
  %148 = vst [vmem:[%s2] sm:$0xff] %v147
  %s149 = scalar_lea.vmem %s2, 8
  %v150 = vld [vmem:[%s149] sm:$0xff]
  %v151 = vadd.f32 %v150, %v139
  %152 = vst [vmem:[%s149] sm:$0xff] %v151
  %s153 = scalar_lea.vmem %s2, 16
  %v154 = vld [vmem:[%s153] sm:$0xff]
  %v155 = vadd.f32 %v154, %v141
  %156 = vst [vmem:[%s153] sm:$0xff] %v155
  %s157 = scalar_lea.vmem %s2, 24
  %v158 = vld [vmem:[%s157] sm:$0xff]
  %v159 = vadd.f32 %v158, %v145
  %160 = vst [vmem:[%s157] sm:$0xff] %v159
  // Predicated region
  $region14: #{refine_loss.1} parent=0 // pred_check
    _
  $region15: #{refine_loss.1} parent=0 // pred_check_branch
    %162 = sbr.rel (0) target = $region17
  $region16: #{refine_loss.1} parent=0 // pred_region
    _
  $region17: #{refine_loss.1} parent=0 // pred_fallthru
    _
  // Predicated region
  $region18: #{refine_loss.1} parent=0 // pred_check
    _
  $region19: #{refine_loss.1} parent=0 // pred_check_branch
    %164 = sbr.rel (0) target = $region21
  $region20: #{refine_loss.1} parent=0 // pred_region
    _
  $region21: #{refine_loss.1} parent=0 // pred_fallthru
    _

</llo_original>
